<compile_context>
chip_gen: v6e
topology: v6e:2x2x1
jax: 0.10.0
libtpu: 0.0.40
codegen_flags: <defaults>
</compile_context>

<pallas_src>
import functools

import jax
import jax.numpy as jnp
from jax.experimental import pallas as pl
from jax.experimental.pallas import tpu as pltpu


# ----------------------------- config ---------------------------------------
BATCH = 256            # rows per call (amortizes launch/DMA overhead)
INPUT_SIZE = 32
HIDDEN_SIZES = [64, 32]
DROPOUT_P = 0.1
TILE_B = 128           # batch tile = one full lane width
SLAB_LANES = 128       # lane-padded parameter slab width


# ----------------------------- kernel ---------------------------------------
def ppo_value_kernel(p_ref, x_ref, m_ref, out_ref, *,
                     hidden_layout, out_layout, mask_rows):
    """One batch tile.

    p_ref : (R, 128)            packed params (resident, constant index_map)
    x_ref : (in, TILE_B)        input, batch on lanes
    m_ref : (sum(hidden), TILE_B) dropout keep-masks (scale pre-folded)
    out_ref: (1, TILE_B)        value row (lane-dense)
    """
    h = x_ref[...]                                            # (in, TILE_B)

    # Hidden layers: NoisyLinear -> Dropout -> ReLU
    for (w_row, b_row, n_out, n_in), m_row in zip(hidden_layout, mask_rows):
        w = p_ref[w_row:w_row + n_out, 0:n_in]                # (out, in)
        b = p_ref[b_row:b_row + n_out, 0:1]                   # (out, 1) -> lane bcast
        h = jnp.dot(w, h, preferred_element_type=jnp.float32) + b
        h = h * m_ref[m_row:m_row + n_out, :]                 # dropout (fused scale)
        h = jnp.maximum(h, 0.0)                               # ReLU

    # Output NoisyLinear (out_features == 1): VPU multiply + sublane reduce
    # instead of an M=1 MXU matmul; result is already lane-dense.
    wo_row, bo_row, n_in_o = out_layout
    wo = p_ref[wo_row:wo_row + n_in_o, 0:1]                   # (n_in_o, 1)
    bo = p_ref[bo_row:bo_row + 1, 0:1]                        # (1, 1)
    out_ref[...] = jnp.sum(h * wo, axis=0, keepdims=True) + bo  # (1, TILE_B)


# ----------------------------- packing helpers -------------------------------
def pack_params(params):
    """Pack [(W(out,in), b(out,)), ..., (Wo(1,in), bo(1,))] into one (R,128) slab.

    Hidden layers store W row-blocks and b as a 1-lane column; the output layer
    stores Wo as a column (for the multiply+reduce path) and bo as a scalar.
    Returns (slab, hidden_layout, out_layout) with static python offsets.
    """
    hidden_params = params[:-1]
    wo, bo = params[-1]

    hidden_layout = []
    row = 0
    for w, _ in hidden_params:
        n_out, n_in = w.shape
        hidden_layout.append((row, row + n_out, n_out, n_in))  # (w_row, b_row, out, in)
        row += 2 * n_out

    n_in_o = wo.shape[1]
    out_layout = (row, row + n_in_o, n_in_o)                   # (wo_row, bo_row, in)
    row += n_in_o + 1

    rows_padded = ((row + 7) // 8) * 8
    slab = jnp.zeros((rows_padded, SLAB_LANES), jnp.float32)
    for (w_row, b_row, n_out, n_in), (w, b) in zip(hidden_layout, hidden_params):
        slab = slab.at[w_row:w_row + n_out, 0:n_in].set(w.astype(jnp.float32))
        slab = slab.at[b_row:b_row + n_out, 0:1].set(
            b.reshape(n_out, 1).astype(jnp.float32))
    wo_row, bo_row, _ = out_layout
    slab = slab.at[wo_row:wo_row + n_in_o, 0:1].set(
        wo.reshape(n_in_o, 1).astype(jnp.float32))
    slab = slab.at[bo_row, 0].set(bo.astype(jnp.float32)[0])
    return slab, tuple(hidden_layout), out_layout


def build_dropout_mask(key, hidden_sizes, batch_padded, p, training):
    """One packed (sum(hidden), batch) f32 slab of keep/(1-p) factors."""
    mask_rows = []
    off = 0
    for h in hidden_sizes:
        mask_rows.append(off)
        off += h
    total = off
    if (not training) or p <= 0.0:
        return jnp.ones((total, batch_padded), jnp.float32), tuple(mask_rows)
    keys = jax.random.split(key, len(hidden_sizes))
    parts = []
    scale = 1.0 / (1.0 - p)
    for k, h in zip(keys, hidden_sizes):
        keep = jax.random.bernoulli(k, 1.0 - p, (h, batch_padded))
        parts.append(keep.astype(jnp.float32) * scale)
    return jnp.concatenate(parts, axis=0), tuple(mask_rows)


# ----------------------------- wrapper ---------------------------------------
def ppo_value_forward(x, params, dropout_key, dropout_p=DROPOUT_P,
                      training=True, tile_b=TILE_B):
    """x: (B, in) f32.  params: per-layer (W_eff (out,in), b_eff (out,))."""
    batch, in_features = x.shape
    hidden_sizes = [w.shape[0] for w, _ in params[:-1]]

    b_pad = pl.cdiv(batch, tile_b) * tile_b
    num_tiles = b_pad // tile_b

    # Transposed, lane-dense activation layout: (features, batch_padded)
    x_t = jnp.zeros((in_features, b_pad), jnp.float32)
    x_t = x_t.at[:, :batch].set(x.T.astype(jnp.float32))

    slab, hidden_layout, out_layout = pack_params(params)
    mask, mask_rows = build_dropout_mask(dropout_key, hidden_sizes, b_pad,
                                         dropout_p, training)

    kernel = functools.partial(ppo_value_kernel,
                               hidden_layout=hidden_layout,
                               out_layout=out_layout,
                               mask_rows=mask_rows)

    out_row = pl.pallas_call(
        kernel,
        out_shape=jax.ShapeDtypeStruct((1, b_pad), jnp.float32),
        grid_spec=pltpu.PrefetchScalarGridSpec(
            num_scalar_prefetch=0,
            grid=(num_tiles,),
            in_specs=[
                pl.BlockSpec(slab.shape, lambda i: (0, 0)),              # params resident
                pl.BlockSpec((in_features, tile_b), lambda i: (0, i)),   # x tile
                pl.BlockSpec((mask.shape[0], tile_b), lambda i: (0, i)), # dropout masks
            ],
            out_specs=pl.BlockSpec((1, tile_b), lambda i: (0, i)),       # lane-dense row
        ),
        compiler_params=pltpu.CompilerParams(
            dimension_semantics=("parallel",)),
    )(slab, x_t, mask)

    return out_row[0, :batch].reshape(batch, 1)


# ------------------------ NoisyLinear parameter setup ------------------------
def _f(x):
    # factorized-noise squashing function from Fortunato et al.
    return jnp.sign(x) * jnp.sqrt(jnp.abs(x))


def make_noisy_linear(key, in_features, out_features, sigma0=0.5):
    """Effective NoisyLinear params: W_eff (out,in), b_eff (out,)."""
    k_mu_w, k_mu_b, k_eps_in, k_eps_out = jax.random.split(key, 4)
    bound = 1.0 / jnp.sqrt(jnp.float32(in_features))

    mu_w = jax.random.uniform(k_mu_w, (out_features, in_features),
                              jnp.float32, -bound, bound)
    mu_b = jax.random.uniform(k_mu_b, (out_features,),
                              jnp.float32, -bound, bound)
    sigma = sigma0 / jnp.sqrt(jnp.float32(in_features))

    eps_in = _f(jax.random.normal(k_eps_in, (in_features,), jnp.float32))
    eps_out = _f(jax.random.normal(k_eps_out, (out_features,), jnp.float32))

    w_eff = mu_w + sigma * jnp.outer(eps_out, eps_in)        # (out, in)
    b_eff = mu_b + sigma * eps_out                           # (out,)
    return w_eff.astype(jnp.float32), b_eff.astype(jnp.float32)


def make_params(key, input_size, hidden_sizes):
    params = []
    sizes = [input_size] + list(hidden_sizes)
    keys = jax.random.split(key, len(hidden_sizes) + 1)
    for i in range(len(hidden_sizes)):
        params.append(make_noisy_linear(keys[i], sizes[i], sizes[i + 1]))
    params.append(make_noisy_linear(keys[-1], hidden_sizes[-1], 1))
    return params


# ----------------------------------- main ------------------------------------
if __name__ == "__main__":
    root = jax.random.PRNGKey(0)
    k_x, k_params, k_drop = jax.random.split(root, 3)

    x = jax.random.normal(k_x, (BATCH, INPUT_SIZE), jnp.float32)
    params = make_params(k_params, INPUT_SIZE, HIDDEN_SIZES)

    out = ppo_value_forward(x, params, k_drop, DROPOUT_P, training=True)
    out = jax.block_until_ready(out)

    assert out.shape == (BATCH, 1), out.shape
    assert out.dtype == jnp.float32, out.dtype
    assert bool(jnp.all(jnp.isfinite(out)))

    print("KERNEL_OK")
</pallas_src>

<mosaic_0001>
module attributes {stable_mosaic.version = 11 : i64} {
  func.func @ppo_value_kernel(%arg0: i32, %arg1: memref<232x128xf32, #tpu.memory_space<vmem>>, %arg2: memref<32x128xf32, #tpu.memory_space<vmem>>, %arg3: memref<96x128xf32, #tpu.memory_space<vmem>>, %arg4: memref<1x128xf32, #tpu.memory_space<vmem>>) attributes {dimension_semantics = [#tpu.dimension_semantics<parallel>], iteration_bounds = array<i64: 2>, scalar_prefetch = 0 : i64, scratch_operands = 0 : i64, tpu.core_type = #tpu.core_type<tc>, window_params = [{pipeline_mode = #tpu.pipeline_mode<synchronous>, transform_indices = @transform_0, window_bounds = array<i64: 232, 128>}, {transform_indices = @transform_1, window_bounds = array<i64: 32, 128>}, {transform_indices = @transform_2, window_bounds = array<i64: 96, 128>}, {transform_indices = @transform_3, window_bounds = array<i64: 1, 128>}]} {
    %c0 = arith.constant 0 : index
    %c0_0 = arith.constant 0 : index
    %0 = vector.load %arg2[%c0, %c0_0] : memref<32x128xf32, #tpu.memory_space<vmem>>, vector<32x128xf32>
    %c0_1 = arith.constant 0 : index
    %c0_2 = arith.constant 0 : index
    %1 = vector.load %arg1[%c0_1, %c0_2] : memref<232x128xf32, #tpu.memory_space<vmem>>, vector<64x32xf32>
    %c64 = arith.constant 64 : index
    %c0_3 = arith.constant 0 : index
    %2 = vector.load %arg1[%c64, %c0_3] : memref<232x128xf32, #tpu.memory_space<vmem>>, vector<64x1xf32>
    %cst = arith.constant dense<0.000000e+00> : vector<64x128xf32>
    %3 = tpu.matmul %1, %0, %cst {dimension_numbers = #tpu.dot_dimension_numbers<[1], [0], [0], [1], [0, 0, 1, 1], [], []>} : vector<64x32xf32>, vector<32x128xf32>, vector<64x128xf32> -> vector<64x128xf32>
    %4 = vector.broadcast %2 : vector<64x1xf32> to vector<64x128xf32>
    %5 = arith.addf %3, %4 : vector<64x128xf32>
    %c0_4 = arith.constant 0 : index
    %c0_5 = arith.constant 0 : index
    %6 = vector.load %arg3[%c0_4, %c0_5] : memref<96x128xf32, #tpu.memory_space<vmem>>, vector<64x128xf32>
    %7 = arith.mulf %5, %6 : vector<64x128xf32>
    %cst_6 = arith.constant 0.000000e+00 : f32
    %8 = vector.broadcast %cst_6 : f32 to vector<64x128xf32>
    %9 = arith.maximumf %7, %8 : vector<64x128xf32>
    %c128 = arith.constant 128 : index
    %c0_7 = arith.constant 0 : index
    %10 = vector.load %arg1[%c128, %c0_7] : memref<232x128xf32, #tpu.memory_space<vmem>>, vector<32x64xf32>
    %c160 = arith.constant 160 : index
    %c0_8 = arith.constant 0 : index
    %11 = vector.load %arg1[%c160, %c0_8] : memref<232x128xf32, #tpu.memory_space<vmem>>, vector<32x1xf32>
    %cst_9 = arith.constant dense<0.000000e+00> : vector<32x128xf32>
    %12 = tpu.matmul %10, %9, %cst_9 {dimension_numbers = #tpu.dot_dimension_numbers<[1], [0], [0], [1], [0, 0, 1, 1], [], []>} : vector<32x64xf32>, vector<64x128xf32>, vector<32x128xf32> -> vector<32x128xf32>
    %13 = vector.broadcast %11 : vector<32x1xf32> to vector<32x128xf32>
    %14 = arith.addf %12, %13 : vector<32x128xf32>
    %c64_10 = arith.constant 64 : index
    %c0_11 = arith.constant 0 : index
    %15 = vector.load %arg3[%c64_10, %c0_11] : memref<96x128xf32, #tpu.memory_space<vmem>>, vector<32x128xf32>
    %16 = arith.mulf %14, %15 : vector<32x128xf32>
    %cst_12 = arith.constant 0.000000e+00 : f32
    %17 = vector.broadcast %cst_12 : f32 to vector<32x128xf32>
    %18 = arith.maximumf %16, %17 : vector<32x128xf32>
    %c192 = arith.constant 192 : index
    %c0_13 = arith.constant 0 : index
    %19 = vector.load %arg1[%c192, %c0_13] : memref<232x128xf32, #tpu.memory_space<vmem>>, vector<32x1xf32>
    %c224 = arith.constant 224 : index
    %c0_14 = arith.constant 0 : index
    %20 = vector.load %arg1[%c224, %c0_14] : memref<232x128xf32, #tpu.memory_space<vmem>>, vector<1x1xf32>
    %21 = vector.broadcast %19 : vector<32x1xf32> to vector<32x128xf32>
    %22 = arith.mulf %18, %21 : vector<32x128xf32>
    %cst_15 = arith.constant dense<0.000000e+00> : vector<128xf32>
    %23 = vector.multi_reduction <add>, %22, %cst_15 [0] : vector<32x128xf32> to vector<128xf32>
    %24 = vector.shape_cast %23 : vector<128xf32> to vector<1x128xf32>
    %25 = vector.broadcast %20 : vector<1x1xf32> to vector<1x128xf32>
    %26 = arith.addf %24, %25 : vector<1x128xf32>
    %c0_16 = arith.constant 0 : index
    %c0_17 = arith.constant 0 : index
    %27 = vector.load %arg4[%c0_16, %c0_17] : memref<1x128xf32, #tpu.memory_space<vmem>>, vector<1x128xf32>
    tpu.vector_store %arg4[%c0_16, %c0_17], %26 {strides = array<i32>} : memref<1x128xf32, #tpu.memory_space<vmem>>, vector<1x128xf32>,
    return
  }
  func.func @transform_0(%arg0: i32) -> (i32, i32) {
    %c0_i32 = arith.constant 0 : i32
    %c0_i32_0 = arith.constant 0 : i32
    %c0_i32_1 = arith.constant 0 : i32
    return %c0_i32, %c0_i32_0 : i32, i32
  }
  func.func @transform_1(%arg0: i32) -> (i32, i32) {
    %c0_i32 = arith.constant 0 : i32
    %c0_i32_0 = arith.constant 0 : i32
    return %c0_i32, %arg0 : i32, i32
  }
  func.func @transform_2(%arg0: i32) -> (i32, i32) {
    %c0_i32 = arith.constant 0 : i32
    %c0_i32_0 = arith.constant 0 : i32
    return %c0_i32, %arg0 : i32, i32
  }
  func.func @transform_3(%arg0: i32) -> (i32, i32) {
    %c0_i32 = arith.constant 0 : i32
    %c0_i32_0 = arith.constant 0 : i32
    return %c0_i32, %arg0 : i32, i32
  }
}

</mosaic_0001>

<llo_original>
// kernel: tpu_custom_call.1
$region0: #{tpu_custom_call.1}
  #allocation0 [shape = 'u32[]', space=smem, size = 0x4, offset = 0x4, fixed_abs, tag = 'smem constant byte address 0x4 - core index']
  #allocation1 [shape = 'u32[144,128]{1,0:T(1,128)}', space=vmem, size = 0x12000, scoped, tag = 'internal scratch']
  %s0 = inlined_call_operand.hbm [shape: f32[232,128], index: 0, kind: input, shape index: {}]
  %s1 = inlined_call_operand.hbm [shape: f32[32,256], index: 1, kind: input, shape index: {}]
  %s2 = inlined_call_operand.hbm [shape: f32[96,256], index: 2, kind: input, shape index: {}]
  %s3 = inlined_call_operand.hbm [shape: f32[1,256], index: 3, kind: output, shape index: {}]
  %s4 = sld [smem:[#allocation0]]
  $region57: #{tpu_custom_call.1} parent=0
    _
  %s6 = ssub.s32 1, %s4
  %s7 = scalar_select 0, %s6, %s4
  $region1: #{tpu_custom_call.1} parent=0
    #allocation2 [shape = 'u8[118784]{0}', space=vmem, size = 0x1d000, scoped, tag = 'input window, operand 0, single buffered']
    #allocation3 [shape = 's32[2]{0}', space=sflag, size = 0x8, scoped, tag = 'scoped memory for tpu_custom_call.1']
    #allocation4 [shape = 's32[2]{0}', space=sflag, size = 0x8, scoped, tag = 'scoped memory for tpu_custom_call.1']
    #allocation5 [shape = 'u8[32768]{0}', space=vmem, size = 0x8000, scoped, tag = 'input window, operand 1']
    #allocation6 [shape = 's32[2]{0}', space=sflag, size = 0x8, scoped, tag = 'scoped memory for tpu_custom_call.1']
    #allocation7 [shape = 'u8[98304]{0}', space=vmem, size = 0x18000, scoped, tag = 'input window, operand 2']
    #allocation8 [shape = 'u8[1024]{0}', space=vmem, size = 0x400, scoped, tag = 'output window, operand 0']
    %8 = vsyncpa [#allocation3], 0
    %9 = vsyncpa [#allocation6], 0
    %s10 = scalar_lea.sflag [#allocation6], 1
    %11 = vsyncpa %s10, 0
    %12 = vsyncpa [#allocation4], 0
    %s13 = scalar_lea.sflag [#allocation4], 1
    %14 = vsyncpa %s13, 0
    loop: start=0, step=1, limit=4
    $region2: #{tpu_custom_call.1} parent=1 // loop_pre_header
      _
    $region3: #{tpu_custom_call.1} parent=1 // loop_header
      %s16 = sphi 0, %s20
      %p17 = scmp.ge.s32.totalorder %s16, 4
      %s24 = sphi 0, %s24
      %s26 = sphi 0, %s24
      %s27 = sphi 0, %s26
      %s41 = sphi 0, %s27
      %s47 = sphi 0, %s49
      %s50 = sphi 0, %s47
      %s51 = sphi 0, %s50
      %s67 = sphi 0, %s51
      %s73 = sphi 0, %s75
      %s76 = sphi 0, %s73
      %s77 = sphi 0, %s76
      %s93 = sphi 0, %s77
      %s99 = sphi 0, %s101
      %s102 = sphi 0, %s99
      %s103 = sphi 0, %s102
      %s119 = sphi 0, %s103
    $region4: #{tpu_custom_call.1} parent=1 // loop_header_branch
      %19 = sbr.rel (%p17) target = $region8
    $region5: #{tpu_custom_call.1} parent=1 // loop_body
      %s21 = ssub.s32 %s16, 1
      %s22 = ssub.s32 %s16, 2
      %s23 = sadd.s32 %s16, 1
      %s25 = sadd.s32 %s24, 1
      %p28 = scmp.eq.s32.totalorder %s16, 1
      %p29 = scmp.ne.s32.totalorder %s24, %s26
      %p30 = scmp.eq.s32.totalorder %s16, 0
      %p31 = por %p29, %p30
      %p32 = scmp.ne.s32.totalorder %s24, %s26
      %p33 = scmp.eq.s32.totalorder %s21, 1
      %p34 = por %p32, %p33
      %p35 = scmp.ne.s32.totalorder %s26, %s27
      %p36 = scmp.eq.s32.totalorder %s21, 0
      %p37 = por %p35, %p36
      %p38 = scmp.ne.s32.totalorder %s26, %s27
      %p39 = scmp.eq.s32.totalorder %s22, 1
      %p40 = por %p38, %p39
      %p42 = scmp.ne.s32.totalorder %s27, %s41
      %p43 = scmp.eq.s32.totalorder %s22, 0
      %p44 = por %p42, %p43
      %s45 = ssub.s32 %s16, %s23
      %p46 = scmp.eq.s32.totalorder %s45, 0
      %s48 = sadd.s32 %s47, 1
      %s49 = scalar_select %p46, %s47, %s48
      %p52 = pneg %p46
      %p53 = scmp.eq.s32.totalorder %s16, 1
      %p54 = por %p52, %p53
      %p55 = scmp.ne.s32.totalorder %s47, %s50
      %p56 = scmp.eq.s32.totalorder %s16, 0
      %p57 = por %p55, %p56
      %p58 = scmp.ne.s32.totalorder %s47, %s50
      %p59 = scmp.eq.s32.totalorder %s21, 1
      %p60 = por %p58, %p59
      %p61 = scmp.ne.s32.totalorder %s50, %s51
      %p62 = scmp.eq.s32.totalorder %s21, 0
      %p63 = por %p61, %p62
      %p64 = scmp.ne.s32.totalorder %s50, %s51
      %p65 = scmp.eq.s32.totalorder %s22, 1
      %p66 = por %p64, %p65
      %p68 = scmp.ne.s32.totalorder %s51, %s67
      %p69 = scmp.eq.s32.totalorder %s22, 0
      %p70 = por %p68, %p69
      %s71 = ssub.s32 %s16, %s23
      %p72 = scmp.eq.s32.totalorder %s71, 0
      %s74 = sadd.s32 %s73, 1
      %s75 = scalar_select %p72, %s73, %s74
      %p78 = pneg %p72
      %p79 = scmp.eq.s32.totalorder %s16, 1
      %p80 = por %p78, %p79
      %p81 = scmp.ne.s32.totalorder %s73, %s76
      %p82 = scmp.eq.s32.totalorder %s16, 0
      %p83 = por %p81, %p82
      %p84 = scmp.ne.s32.totalorder %s73, %s76
      %p85 = scmp.eq.s32.totalorder %s21, 1
      %p86 = por %p84, %p85
      %p87 = scmp.ne.s32.totalorder %s76, %s77
      %p88 = scmp.eq.s32.totalorder %s21, 0
      %p89 = por %p87, %p88
      %p90 = scmp.ne.s32.totalorder %s76, %s77
      %p91 = scmp.eq.s32.totalorder %s22, 1
      %p92 = por %p90, %p91
      %p94 = scmp.ne.s32.totalorder %s77, %s93
      %p95 = scmp.eq.s32.totalorder %s22, 0
      %p96 = por %p94, %p95
      %s97 = ssub.s32 %s16, %s23
      %p98 = scmp.eq.s32.totalorder %s97, 0
      %s100 = sadd.s32 %s99, 1
      %s101 = scalar_select %p98, %s99, %s100
      %p104 = pneg %p98
      %p105 = scmp.eq.s32.totalorder %s16, 1
      %p106 = por %p104, %p105
      %p107 = scmp.ne.s32.totalorder %s99, %s102
      %p108 = scmp.eq.s32.totalorder %s16, 0
      %p109 = por %p107, %p108
      %p110 = scmp.ne.s32.totalorder %s99, %s102
      %p111 = scmp.eq.s32.totalorder %s21, 1
      %p112 = por %p110, %p111
      %p113 = scmp.ne.s32.totalorder %s102, %s103
      %p114 = scmp.eq.s32.totalorder %s21, 0
      %p115 = por %p113, %p114
      %p116 = scmp.ne.s32.totalorder %s102, %s103
      %p117 = scmp.eq.s32.totalorder %s22, 1
      %p118 = por %p116, %p117
      %p120 = scmp.ne.s32.totalorder %s103, %s119
      %p121 = scmp.eq.s32.totalorder %s22, 0
      %p122 = por %p120, %p121
      %p123 = scmp.le.s32.totalorder 1, %s16
      %p124 = scmp.lt.s32.totalorder %s16, 3
      %p125 = pnand %p123, %p124
      %p126 = pneg %p125
      // Predicated region
      $region9: #{tpu_custom_call.1} parent=5 // pred_check
        _
      $region10: #{tpu_custom_call.1} parent=5 // pred_check_branch
        %128 = sbr.rel (%p125) target = $region12
      $region11: #{tpu_custom_call.1} parent=5 // pred_region
        %s129 = ssub.s32 %s16, 1
        // Predicated region
        $region13: #{tpu_custom_call.1} parent=11 // pred_check
          %p130 = pneg %p37
        $region14: #{tpu_custom_call.1} parent=11 // pred_check_branch
          %132 = sbr.rel (%p130) target = $region16
        $region15: #{tpu_custom_call.1} parent=11 // pred_region
          %s134 = ssub.s32 3712, 3712
          %135 = vsyncadd [#allocation3], %s134
          %s136 = sshll.u32 [#allocation2], 4
          %s137 = int_to_ptr.vmem [resolvable:$true] %s136
          %142 = dma.hbm_to_vmem [thread:$0]  %s0, 3712, %s137, [#allocation3], 128, 128, 8
        $region16: #{tpu_custom_call.1} parent=11 // pred_fallthru
          _
      $region12: #{tpu_custom_call.1} parent=5 // pred_fallthru
        _
      %p143 = scmp.lt.s32.totalorder %s16, 2
      // Predicated region
      $region17: #{tpu_custom_call.1} parent=5 // pred_check
        %p144 = pneg %p143
      $region18: #{tpu_custom_call.1} parent=5 // pred_check_branch
        %146 = sbr.rel (%p144) target = $region20
      $region19: #{tpu_custom_call.1} parent=5 // pred_region
        // Predicated region
        $region21: #{tpu_custom_call.1} parent=19 // pred_check
          %p147 = pneg %p57
        $region22: #{tpu_custom_call.1} parent=19 // pred_check_branch
          %149 = sbr.rel (%p147) target = $region24
        $region23: #{tpu_custom_call.1} parent=19 // pred_region
          %s150 = sand.u32 %s16, 1
          %s151 = scalar_lea.sflag [#allocation6], %s150
          %s152 = sand.u32 %s47, 1
          %s153 = smul.addr %s152, 32
          %s154 = scalar_lea.vmem [#allocation5], %s153
          %s156 = ssub.s32 512, 512
          %157 = vsyncadd %s151, %s156
          %s158 = smul.addr %s16, 128
          %s159 = scalar_lea.hbm %s1, %s158
          %s160 = sshll.u32 %s154, 4
          %s161 = int_to_ptr.vmem [resolvable:$true] %s160
          %166 = dma.hbm_to_vmem [thread:$0]  %s159, 512, %s161, %s151, 256, 128, 8
        $region24: #{tpu_custom_call.1} parent=19 // pred_fallthru
          _
        // Predicated region
        $region25: #{tpu_custom_call.1} parent=19 // pred_check
          %p167 = pneg %p83
        $region26: #{tpu_custom_call.1} parent=19 // pred_check_branch
          %169 = sbr.rel (%p167) target = $region28
        $region27: #{tpu_custom_call.1} parent=19 // pred_region
          %s170 = sand.u32 %s16, 1
          %s171 = scalar_lea.sflag [#allocation6], %s170
          %s172 = sand.u32 %s73, 1
          %s173 = smul.addr %s172, 96
          %s174 = scalar_lea.vmem [#allocation7], %s173
          %s176 = ssub.s32 1536, 1536
          %177 = vsyncadd %s171, %s176
          %s178 = smul.addr %s16, 128
          %s179 = scalar_lea.hbm %s2, %s178
          %s180 = sshll.u32 %s174, 4
          %s181 = int_to_ptr.vmem [resolvable:$true] %s180
          %186 = dma.hbm_to_vmem [thread:$0]  %s179, 1536, %s181, %s171, 256, 128, 8
        $region28: #{tpu_custom_call.1} parent=19 // pred_fallthru
          _
      $region20: #{tpu_custom_call.1} parent=5 // pred_fallthru
        _
      %p187 = scmp.le.s32.totalorder 1, %s16
      %p188 = scmp.lt.s32.totalorder %s16, 3
      %p189 = pnand %p187, %p188
      %p190 = pneg %p189
      // Predicated region
      $region29: #{tpu_custom_call.1} parent=5 // pred_check
        _
      $region30: #{tpu_custom_call.1} parent=5 // pred_check_branch
        %192 = sbr.rel (%p189) target = $region32
      $region31: #{tpu_custom_call.1} parent=5 // pred_region
        %s193 = ssub.s32 %s16, 1
        // Predicated region
        $region33: #{tpu_custom_call.1} parent=31 // pred_check
          %p194 = pneg %p37
        $region34: #{tpu_custom_call.1} parent=31 // pred_check_branch
          %196 = sbr.rel (%p194) target = $region36
        $region35: #{tpu_custom_call.1} parent=31 // pred_region
          %197 = dma.done [#allocation3], 3712
        $region36: #{tpu_custom_call.1} parent=31 // pred_fallthru
          _
        %s198 = sand.u32 %s21, 1
        %s199 = scalar_lea.sflag [#allocation6], %s198
        %s200 = sand.u32 %s50, 1
        %s201 = smul.addr %s200, 32
        %s202 = scalar_lea.vmem [#allocation5], %s201
        // Predicated region
        $region37: #{tpu_custom_call.1} parent=31 // pred_check
          %p203 = pneg %p63
        $region38: #{tpu_custom_call.1} parent=31 // pred_check_branch
          %205 = sbr.rel (%p203) target = $region40
        $region39: #{tpu_custom_call.1} parent=31 // pred_region
          %206 = dma.done %s199, 512
        $region40: #{tpu_custom_call.1} parent=31 // pred_fallthru
          _
        %s207 = sand.u32 %s21, 1
        %s208 = scalar_lea.sflag [#allocation6], %s207
        %s209 = sand.u32 %s76, 1
        %s210 = smul.addr %s209, 96
        %s211 = scalar_lea.vmem [#allocation7], %s210
        // Predicated region
        $region41: #{tpu_custom_call.1} parent=31 // pred_check
          %p212 = pneg %p89
        $region42: #{tpu_custom_call.1} parent=31 // pred_check_branch
          %214 = sbr.rel (%p212) target = $region44
        $region43: #{tpu_custom_call.1} parent=31 // pred_region
          %215 = dma.done %s208, 1536
        $region44: #{tpu_custom_call.1} parent=31 // pred_fallthru
          _
        %p216 = pneg %p37
        %p217 = pneg %p34
        %s218 = sand.u32 %s21, 1
        %s219 = scalar_lea.sflag [#allocation6], %s218
        %s220 = sand.u32 %s50, 1
        %s221 = smul.addr %s220, 32
        %s222 = scalar_lea.vmem [#allocation5], %s221
        %p223 = pneg %p63
        %p224 = pneg %p60
        %s225 = sand.u32 %s21, 1
        %s226 = scalar_lea.sflag [#allocation6], %s225
        %s227 = sand.u32 %s76, 1
        %s228 = smul.addr %s227, 96
        %s229 = scalar_lea.vmem [#allocation7], %s228
        %p230 = pneg %p89
        %p231 = pneg %p86
        %p232 = pneg %p115
        %p233 = pneg %p112
        %s234 = sand.u32 %s102, 1
        %s235 = scalar_lea.sflag [#allocation4], %s234
        %s236 = sand.u32 %s102, 1
        %s237 = scalar_lea.vmem [#allocation8], %s236
        %v238 = vld [vmem:[%s202] sm:$0xff]
        %v239 = vld [vmem:[%s202 + $0x8] sm:$0xff]
        %v240 = vld [vmem:[%s202 + $0x10] sm:$0xff]
        %v241 = vld [vmem:[%s202 + $0x18] sm:$0xff]
        %v242 = vld [vmem:[#allocation2] sm:$0xff]
        %v243 = vld [vmem:[#allocation2 + $0x8] sm:$0xff]
        %v244 = vld [vmem:[#allocation2 + $0x10] sm:$0xff]
        %v245 = vld [vmem:[#allocation2 + $0x18] sm:$0xff]
        %v246 = vld [vmem:[#allocation2 + $0x20] sm:$0xff]
        %v247 = vld [vmem:[#allocation2 + $0x28] sm:$0xff]
        %v248 = vld [vmem:[#allocation2 + $0x30] sm:$0xff]
        %v249 = vld [vmem:[#allocation2 + $0x38] sm:$0xff]
        %v250 = vld [vmem:[#allocation2 + $0x40] sm:$0xff]
        %v251 = vld [vmem:[#allocation2 + $0x48] sm:$0xff]
        %v252 = vld [vmem:[#allocation2 + $0x50] sm:$0xff]
        %v253 = vld [vmem:[#allocation2 + $0x58] sm:$0xff]
        %v254 = vld [vmem:[#allocation2 + $0x60] sm:$0xff]
        %v255 = vld [vmem:[#allocation2 + $0x68] sm:$0xff]
        %v256 = vld [vmem:[#allocation2 + $0x70] sm:$0xff]
        %v257 = vld [vmem:[#allocation2 + $0x78] sm:$0xff]
        %259 = vset.pattern.permute.xlu0 0
        %260 = vperm.xlu0 %259, %v250
        %v261 = vpop.permute.xlu0 %260
        %264 = vset.pattern.permute.xlu0 0
        %265 = vperm.xlu0 %264, %v251
        %v266 = vpop.permute.xlu0 %265
        %269 = vset.pattern.permute.xlu0 0
        %270 = vperm.xlu0 %269, %v252
        %v271 = vpop.permute.xlu0 %270
        %274 = vset.pattern.permute.xlu0 0
        %275 = vperm.xlu0 %274, %v253
        %v276 = vpop.permute.xlu0 %275
        %279 = vset.pattern.permute.xlu0 0
        %280 = vperm.xlu0 %279, %v254
        %v281 = vpop.permute.xlu0 %280
        %284 = vset.pattern.permute.xlu0 0
        %285 = vperm.xlu0 %284, %v255
        %v286 = vpop.permute.xlu0 %285
        %289 = vset.pattern.permute.xlu0 0
        %290 = vperm.xlu0 %289, %v256
        %v291 = vpop.permute.xlu0 %290
        %294 = vset.pattern.permute.xlu0 0
        %295 = vperm.xlu0 %294, %v257
        %v296 = vpop.permute.xlu0 %295
        %vm298 = vcmask 261120
        %v300 = vsel %vm298, %v242, 0
        %v303 = vsel %vm298, %v243, 0
        %v306 = vsel %vm298, %v244, 0
        %v309 = vsel %vm298, %v245, 0
        %v312 = vsel %vm298, %v246, 0
        %v315 = vsel %vm298, %v247, 0
        %v318 = vsel %vm298, %v248, 0
        %v321 = vsel %vm298, %v249, 0
        %323 = vmatprep.subr.mxu0 0.0
        %324 = vmatpush1.msra.mxu0 0.0
        %325 = vmatprep.subr.mxu0 0.0
        %326 = vmatpush1.msra.mxu0 0.0
        %327 = vmatprep.subr.mxu0 0.0
        %328 = vmatpush1.msra.mxu0 0.0
        %329 = vmatprep.subr.mxu0 0.0
        %330 = vmatpush1.msra.mxu0 0.0
        %331 = vmatprep.subr.mxu0 0.0
        %332 = vmatpush1.msra.mxu0 0.0
        %333 = vmatprep.subr.mxu0 0.0
        %334 = vmatpush1.msra.mxu0 0.0
        %335 = vmatprep.subr.mxu0 0.0
        %336 = vmatpush1.msra.mxu0 0.0
        %337 = vmatprep.subr.mxu0 0.0
        %338 = vmatpush1.msra.mxu0 0.0
        %339 = vmatprep.subr.mxu0 0.0
        %340 = vmatpush1.msra.mxu0 0.0
        %341 = vmatprep.subr.mxu0 0.0
        %342 = vmatpush1.msra.mxu0 0.0
        %343 = vmatprep.subr.mxu0 0.0
        %344 = vmatpush1.msra.mxu0 0.0
        %345 = vmatprep.subr.mxu0 0.0
        %346 = vmatpush1.msra.mxu0 0.0
        %347 = vmatprep.subr.mxu0 0.0
        %348 = vmatpush1.msra.mxu0 %v241
        %349 = vmatprep.subr.mxu0 0.0
        %350 = vmatpush1.msra.mxu0 %v240
        %351 = vmatprep.subr.mxu0 0.0
        %352 = vmatpush1.msra.mxu0 %v239
        %353 = vmatprep.subr.mxu0 0.0
        %354 = vmatpush1.msra.mxu0 %v238
        %355 = vmatprep.subr.mxu0 0.0
        %356 = vmatpush2.msra.mxu0 0.0
        %357 = vmatprep.subr.mxu0 0.0
        %358 = vmatpush2.msra.mxu0 0.0
        %359 = vmatprep.subr.mxu0 0.0
        %360 = vmatpush2.msra.mxu0 0.0
        %361 = vmatprep.subr.mxu0 0.0
        %362 = vmatpush2.msra.mxu0 0.0
        %363 = vmatprep.subr.mxu0 0.0
        %364 = vmatpush2.msra.mxu0 0.0
        %365 = vmatprep.subr.mxu0 0.0
        %366 = vmatpush2.msra.mxu0 0.0
        %367 = vmatprep.subr.mxu0 0.0
        %368 = vmatpush2.msra.mxu0 0.0
        %369 = vmatprep.subr.mxu0 0.0
        %370 = vmatpush2.msra.mxu0 0.0
        %371 = vmatprep.subr.mxu0 0.0
        %372 = vmatpush2.msra.mxu0 0.0
        %373 = vmatprep.subr.mxu0 0.0
        %374 = vmatpush2.msra.mxu0 0.0
        %375 = vmatprep.subr.mxu0 0.0
        %376 = vmatpush2.msra.mxu0 0.0
        %377 = vmatprep.subr.mxu0 0.0
        %378 = vmatpush2.msra.mxu0 0.0
        %379 = vmatprep.subr.mxu0 0.0
        %380 = vmatpush2.msra.mxu0 0.0
        %381 = vmatprep.subr.mxu0 0.0
        %382 = vmatpush2.msra.mxu0 0.0
        %383 = vmatprep.subr.mxu0 0.0
        %384 = vmatpush2.msra.mxu0 0.0
        %385 = vmatprep.subr.mxu0 0.0
        %386 = vmatpush2.msra.mxu0 0.0
        %387 = vmatprep.mubr.f32.mxu0 0.0
        %388 = vmatmul.mubr.f32.gmra.mxu0 %v300
        %v389 = vpop.f32.mrf.mxu0
        %v390 = vadd.f32 %v261, %v389
        %v391 = vpop.f32.mrf.mxu0
        %392 = vmatprep.mubr.f32.mxu0 0.0
        %393 = vmatmul.mubr.f32.gmra.mxu0 %v303
        %v394 = vpop.f32.mrf.mxu0
        %v395 = vadd.f32 %v266, %v394
        %v396 = vpop.f32.mrf.mxu0
        %397 = vmatprep.mubr.f32.mxu0 0.0
        %398 = vmatmul.mubr.f32.gmra.mxu0 %v306
        %v399 = vpop.f32.mrf.mxu0
        %v400 = vadd.f32 %v271, %v399
        %v401 = vpop.f32.mrf.mxu0
        %402 = vmatprep.mubr.f32.mxu0 0.0
        %403 = vmatmul.mubr.f32.gmra.mxu0 %v309
        %v404 = vpop.f32.mrf.mxu0
        %v405 = vadd.f32 %v276, %v404
        %v406 = vpop.f32.mrf.mxu0
        %407 = vmatprep.mubr.f32.mxu0 0.0
        %408 = vmatmul.mubr.f32.gmra.mxu0 %v312
        %v409 = vpop.f32.mrf.mxu0
        %v410 = vadd.f32 %v281, %v409
        %v411 = vpop.f32.mrf.mxu0
        %412 = vmatprep.mubr.f32.mxu0 0.0
        %413 = vmatmul.mubr.f32.gmra.mxu0 %v315
        %v414 = vpop.f32.mrf.mxu0
        %v415 = vadd.f32 %v286, %v414
        %v416 = vpop.f32.mrf.mxu0
        %417 = vmatprep.mubr.f32.mxu0 0.0
        %418 = vmatmul.mubr.f32.gmra.mxu0 %v318
        %v419 = vpop.f32.mrf.mxu0
        %v420 = vadd.f32 %v291, %v419
        %v421 = vpop.f32.mrf.mxu0
        %422 = vmatprep.mubr.f32.mxu0 0.0
        %423 = vmatmul.mubr.f32.gmra.mxu0 %v321
        %v424 = vpop.f32.mrf.mxu0
        %v425 = vadd.f32 %v296, %v424
        %v426 = vpop.f32.mrf.mxu0
        %427 = vdwg.mxu0
        %v428 = vld [vmem:[%s211] sm:$0xff]
        %v429 = vld [vmem:[%s211 + $0x8] sm:$0xff]
        %v430 = vld [vmem:[%s211 + $0x10] sm:$0xff]
        %v431 = vld [vmem:[%s211 + $0x18] sm:$0xff]
        %v432 = vld [vmem:[%s211 + $0x20] sm:$0xff]
        %v433 = vld [vmem:[%s211 + $0x28] sm:$0xff]
        %v434 = vld [vmem:[%s211 + $0x30] sm:$0xff]
        %v435 = vld [vmem:[%s211 + $0x38] sm:$0xff]
        %v436 = vmul.f32 %v390, %v428
        %v437 = vmul.f32 %v395, %v429
        %v438 = vmul.f32 %v400, %v430
        %v439 = vmul.f32 %v405, %v431
        %v440 = vmul.f32 %v410, %v432
        %v441 = vmul.f32 %v415, %v433
        %v442 = vmul.f32 %v420, %v434
        %v443 = vmul.f32 %v425, %v435
        %v444 = vmax.f32 %v436, 0.0
        %v445 = vmax.f32 %v437, 0.0
        %v446 = vmax.f32 %v438, 0.0
        %v447 = vmax.f32 %v439, 0.0
        %v448 = vmax.f32 %v440, 0.0
        %v449 = vmax.f32 %v441, 0.0
        %v450 = vmax.f32 %v442, 0.0
        %v451 = vmax.f32 %v443, 0.0
        %v452 = vld [vmem:[#allocation2 + $0x80] sm:$0xff]
        %v453 = vld [vmem:[#allocation2 + $0x88] sm:$0xff]
        %v454 = vld [vmem:[#allocation2 + $0x90] sm:$0xff]
        %v455 = vld [vmem:[#allocation2 + $0x98] sm:$0xff]
        %v456 = vld [vmem:[#allocation2 + $0xa0] sm:$0xff]
        %v457 = vld [vmem:[#allocation2 + $0xa8] sm:$0xff]
        %v458 = vld [vmem:[#allocation2 + $0xb0] sm:$0xff]
        %v459 = vld [vmem:[#allocation2 + $0xb8] sm:$0xff]
        %461 = vset.pattern.permute.xlu0 0
        %462 = vperm.xlu0 %461, %v456
        %v463 = vpop.permute.xlu0 %462
        %466 = vset.pattern.permute.xlu0 0
        %467 = vperm.xlu0 %466, %v457
        %v468 = vpop.permute.xlu0 %467
        %471 = vset.pattern.permute.xlu0 0
        %472 = vperm.xlu0 %471, %v458
        %v473 = vpop.permute.xlu0 %472
        %476 = vset.pattern.permute.xlu0 0
        %477 = vperm.xlu0 %476, %v459
        %v478 = vpop.permute.xlu0 %477
        %vm480 = vcmask 523264
        %v482 = vsel %vm480, %v452, 0
        %v485 = vsel %vm480, %v453, 0
        %v488 = vsel %vm480, %v454, 0
        %v491 = vsel %vm480, %v455, 0
        %493 = vmatprep.subr.mxu0 0.0
        %494 = vmatpush1.msra.mxu0 0.0
        %495 = vmatprep.subr.mxu0 0.0
        %496 = vmatpush1.msra.mxu0 0.0
        %497 = vmatprep.subr.mxu0 0.0
        %498 = vmatpush1.msra.mxu0 0.0
        %499 = vmatprep.subr.mxu0 0.0
        %500 = vmatpush1.msra.mxu0 0.0
        %501 = vmatprep.subr.mxu0 0.0
        %502 = vmatpush1.msra.mxu0 0.0
        %503 = vmatprep.subr.mxu0 0.0
        %504 = vmatpush1.msra.mxu0 0.0
        %505 = vmatprep.subr.mxu0 0.0
        %506 = vmatpush1.msra.mxu0 0.0
        %507 = vmatprep.subr.mxu0 0.0
        %508 = vmatpush1.msra.mxu0 0.0
        %509 = vmatprep.subr.mxu0 0.0
        %510 = vmatpush1.msra.mxu0 %v451
        %511 = vmatprep.subr.mxu0 0.0
        %512 = vmatpush1.msra.mxu0 %v450
        %513 = vmatprep.subr.mxu0 0.0
        %514 = vmatpush1.msra.mxu0 %v449
        %515 = vmatprep.subr.mxu0 0.0
        %516 = vmatpush1.msra.mxu0 %v448
        %517 = vmatprep.subr.mxu0 0.0
        %518 = vmatpush1.msra.mxu0 %v447
        %519 = vmatprep.subr.mxu0 0.0
        %520 = vmatpush1.msra.mxu0 %v446
        %521 = vmatprep.subr.mxu0 0.0
        %522 = vmatpush1.msra.mxu0 %v445
        %523 = vmatprep.subr.mxu0 0.0
        %524 = vmatpush1.msra.mxu0 %v444
        %525 = vmatprep.subr.mxu0 0.0
        %526 = vmatpush2.msra.mxu0 0.0
        %527 = vmatprep.subr.mxu0 0.0
        %528 = vmatpush2.msra.mxu0 0.0
        %529 = vmatprep.subr.mxu0 0.0
        %530 = vmatpush2.msra.mxu0 0.0
        %531 = vmatprep.subr.mxu0 0.0
        %532 = vmatpush2.msra.mxu0 0.0
        %533 = vmatprep.subr.mxu0 0.0
        %534 = vmatpush2.msra.mxu0 0.0
        %535 = vmatprep.subr.mxu0 0.0
        %536 = vmatpush2.msra.mxu0 0.0
        %537 = vmatprep.subr.mxu0 0.0
        %538 = vmatpush2.msra.mxu0 0.0
        %539 = vmatprep.subr.mxu0 0.0
        %540 = vmatpush2.msra.mxu0 0.0
        %541 = vmatprep.subr.mxu0 0.0
        %542 = vmatpush2.msra.mxu0 0.0
        %543 = vmatprep.subr.mxu0 0.0
        %544 = vmatpush2.msra.mxu0 0.0
        %545 = vmatprep.subr.mxu0 0.0
        %546 = vmatpush2.msra.mxu0 0.0
        %547 = vmatprep.subr.mxu0 0.0
        %548 = vmatpush2.msra.mxu0 0.0
        %549 = vmatprep.subr.mxu0 0.0
        %550 = vmatpush2.msra.mxu0 0.0
        %551 = vmatprep.subr.mxu0 0.0
        %552 = vmatpush2.msra.mxu0 0.0
        %553 = vmatprep.subr.mxu0 0.0
        %554 = vmatpush2.msra.mxu0 0.0
        %555 = vmatprep.subr.mxu0 0.0
        %556 = vmatpush2.msra.mxu0 0.0
        %557 = vmatprep.mubr.f32.mxu0 0.0
        %558 = vmatmul.mubr.f32.gmra.mxu0 %v482
        %v559 = vpop.f32.mrf.mxu0
        %v560 = vadd.f32 %v463, %v559
        %v561 = vpop.f32.mrf.mxu0
        %562 = vmatprep.mubr.f32.mxu0 0.0
        %563 = vmatmul.mubr.f32.gmra.mxu0 %v485
        %v564 = vpop.f32.mrf.mxu0
        %v565 = vadd.f32 %v468, %v564
        %v566 = vpop.f32.mrf.mxu0
        %567 = vmatprep.mubr.f32.mxu0 0.0
        %568 = vmatmul.mubr.f32.gmra.mxu0 %v488
        %v569 = vpop.f32.mrf.mxu0
        %v570 = vadd.f32 %v473, %v569
        %v571 = vpop.f32.mrf.mxu0
        %572 = vmatprep.mubr.f32.mxu0 0.0
        %573 = vmatmul.mubr.f32.gmra.mxu0 %v491
        %v574 = vpop.f32.mrf.mxu0
        %v575 = vadd.f32 %v478, %v574
        %v576 = vpop.f32.mrf.mxu0
        %577 = vdwg.mxu0
        %v578 = vld [vmem:[%s211 + $0x40] sm:$0xff]
        %v579 = vld [vmem:[%s211 + $0x48] sm:$0xff]
        %v580 = vld [vmem:[%s211 + $0x50] sm:$0xff]
        %v581 = vld [vmem:[%s211 + $0x58] sm:$0xff]
        %v582 = vmul.f32 %v560, %v578
        %v583 = vmul.f32 %v565, %v579
        %v584 = vmul.f32 %v570, %v580
        %v585 = vmul.f32 %v575, %v581
        %v586 = vmax.f32 %v582, 0.0
        %v587 = vmax.f32 %v583, 0.0
        %v588 = vmax.f32 %v584, 0.0
        %v589 = vmax.f32 %v585, 0.0
        %v590 = vld [vmem:[#allocation2 + $0xc0] sm:$0xff]
        %v591 = vld [vmem:[#allocation2 + $0xc8] sm:$0xff]
        %v592 = vld [vmem:[#allocation2 + $0xd0] sm:$0xff]
        %v593 = vld [vmem:[#allocation2 + $0xd8] sm:$0xff]
        %v594 = vld [vmem:[#allocation2 + $0xe0] sm:$0x1]
        %596 = vset.pattern.permute.xlu0 0
        %597 = vperm.xlu0 %596, %v590
        %v598 = vpop.permute.xlu0 %597
        %601 = vset.pattern.permute.xlu0 0
        %602 = vperm.xlu0 %601, %v591
        %v603 = vpop.permute.xlu0 %602
        %606 = vset.pattern.permute.xlu0 0
        %607 = vperm.xlu0 %606, %v592
        %v608 = vpop.permute.xlu0 %607
        %611 = vset.pattern.permute.xlu0 0
        %612 = vperm.xlu0 %611, %v593
        %v613 = vpop.permute.xlu0 %612
        %v615 = vmul.f32 %v586, %v598
        %v616 = vmul.f32 %v587, %v603
        %v617 = vmul.f32 %v588, %v608
        %v618 = vmul.f32 %v589, %v613
        %v619 = vadd.f32 %v615, %v616
        %v620 = vadd.f32 %v619, %v617
        %v621 = vadd.f32 %v620, %v618
        %v622 = vrot.slane %v621, 4
        %v623 = vadd.f32 %v621, %v622
        %v624 = vrot.slane %v623, 2
        %v625 = vadd.f32 %v623, %v624
        %v626 = vrot.slane %v625, 1
        %v627 = vadd.f32 %v625, %v626
        %629 = vset.pattern.permute.xlu0 0
        %630 = vperm.xlu0 %629, %v594
        %v631 = vpop.permute.xlu0 %630
        %v633 = vadd.f32 %v627, %v631
        %634 = vst [vmem:[%s237] sm:$0x1] %v633
        %s635 = sand.u32 %s102, 1
        %s636 = scalar_lea.sflag [#allocation4], %s635
        %s637 = sand.u32 %s102, 1
        %s638 = scalar_lea.vmem [#allocation8], %s637
        // Predicated region
        $region45: #{tpu_custom_call.1} parent=31 // pred_check
          %p639 = pneg %p112
        $region46: #{tpu_custom_call.1} parent=31 // pred_check_branch
          %641 = sbr.rel (%p639) target = $region48
        $region47: #{tpu_custom_call.1} parent=31 // pred_region
          %s643 = ssub.s32 16, 16
          %644 = vsyncadd %s636, %s643
          %s645 = smul.addr %s21, 16
          %s646 = scalar_lea.hbm %s3, %s645
          %s648 = sshll.u32 %s638, 4
          %s649 = int_to_ptr.vmem [resolvable:$true] %s648
          %651 = dma.vmem_to_hbm [thread:$0]  %s649, 16, %s646, %s636
        $region48: #{tpu_custom_call.1} parent=31 // pred_fallthru
          _
      $region32: #{tpu_custom_call.1} parent=5 // pred_fallthru
        _
      %p652 = scmp.le.s32.totalorder 2, %s16
      // Predicated region
      $region49: #{tpu_custom_call.1} parent=5 // pred_check
        %p653 = pneg %p652
      $region50: #{tpu_custom_call.1} parent=5 // pred_check_branch
        %655 = sbr.rel (%p653) target = $region52
      $region51: #{tpu_custom_call.1} parent=5 // pred_region
        %s656 = ssub.s32 %s16, 2
        // Predicated region
        $region53: #{tpu_custom_call.1} parent=51 // pred_check
          %p657 = pneg %p118
        $region54: #{tpu_custom_call.1} parent=51 // pred_check_branch
          %659 = sbr.rel (%p657) target = $region56
        $region55: #{tpu_custom_call.1} parent=51 // pred_region
          %s660 = sand.u32 %s103, 1
          %s661 = scalar_lea.sflag [#allocation4], %s660
          %s662 = sand.u32 %s103, 1
          %s663 = scalar_lea.vmem [#allocation8], %s662
          %664 = dma.done %s661, 16
        $region56: #{tpu_custom_call.1} parent=51 // pred_fallthru
          _
      $region52: #{tpu_custom_call.1} parent=5 // pred_fallthru
        _
    $region6: #{tpu_custom_call.1} parent=1 // loop_footer
      %s20 = sadd.s32 1, %s16
    $region7: #{tpu_custom_call.1} parent=1 // loop_footer_branch
      %15 = sbr.rel target = $region3
    $region8: #{tpu_custom_call.1} parent=1 // loop_exit
      _
    %665 = vsyncpa [#allocation3], 1
    %s666 = scalar_lea.sflag [#allocation3], 1
    %667 = vsyncpa %s666, 1
    %668 = vsyncpa [#allocation6], 1
    %s669 = scalar_lea.sflag [#allocation6], 1
    %670 = vsyncpa %s669, 1
    %671 = vsyncpa [#allocation4], 1
    %s672 = scalar_lea.sflag [#allocation4], 1
    %673 = vsyncpa %s672, 1

</llo_original>
